<compile_context>
chip_gen: v5e
topology: v5e:2x2
jax: 0.10.0
libtpu: 0.0.40
codegen_flags: <defaults>
</compile_context>

<pallas_src>
import jax
import jax.numpy as jnp
from jax import lax
from jax.experimental import pallas as pl
from jax.experimental.pallas import tpu as pltpu


# ----------------------------- configuration --------------------------------
INPUT_HEIGHT = 14          # module default input_height
INPUT_CHANNELS = 16        # module default input_channels
NODES_H, NODES_W = 3, 3    # h, w
NUM_NODES = NODES_H * NODES_W
OFFSET_LSTM_DIM = 32       # args.offset_lstm_dim (not given in snippet; fixed here)


# ------------------------- positional embedding ------------------------------
def positional_emb(num_channels: int, H: int, W: int) -> jnp.ndarray:
    """Port of GloRe.positional_emb -> (num_channels, H, W)."""
    channels = num_channels // 2
    T = jnp.power(10000.0, jnp.arange(channels, dtype=jnp.float32) / channels)
    Tr = T.reshape(-1, 2)
    T_even = Tr[:, :1][None]          # (1, channels//2, 1)
    T_odd = Tr[:, 1:][None]           # (1, channels//2, 1)

    pos_h = jnp.linspace(0.0, 1.0, H)[:, None, None]            # (H,1,1)
    emb_h_even = jnp.sin(pos_h / T_even)
    emb_h_odd = jnp.cos(pos_h / T_odd)
    emb_h = jnp.concatenate([emb_h_even, emb_h_odd], axis=2).reshape(H, 1, channels)
    emb_h = jnp.tile(emb_h, (1, W, 1))                          # (H, W, channels)

    pos_w = jnp.linspace(0.0, 1.0, W)[:, None, None]
    emb_w_even = jnp.sin(pos_w / T_even)
    emb_w_odd = jnp.cos(pos_w / T_odd)
    emb_w = jnp.concatenate([emb_w_even, emb_w_odd], axis=2).reshape(1, W, channels)
    emb_w = jnp.tile(emb_w, (H, 1, 1))                          # (H, W, channels)

    emb = jnp.concatenate([emb_h, emb_w], axis=2)               # (H, W, 2*channels)
    return jnp.transpose(emb, (2, 0, 1)).astype(jnp.float32)    # (C, H, W)


# ------------------------------ Pallas kernel --------------------------------
def _make_glore_kernel(batch_block: int, p_pad: int, compute_dtype):
    cd = compute_dtype

    def kernel(x_ref, emb_ref, wm_ref, bm_ref, wu_ref, bu_ref, o_ref):
        # x_ref  : (C, BB*Pp)  batch chunk, batch folded onto the lane axis
        # emb_ref: (C, Pp)     precomputed (hoisted) projected positional embedding
        # wm/bm  : (N, C), (N, 1)   mask_conv (1x1)
        # wu/bu  : (D, C), (D, 1)   update (Conv1d, kernel size 1)
        # o_ref  : (BB, D, N)
        x = x_ref[...]                                                   # (C, BB*Pp) f32

        # mask logits over the node channels, one wide matmul over all lanes.
        logits = jnp.dot(wm_ref[...].astype(cd), x.astype(cd),
                         preferred_element_type=jnp.float32) + bm_ref[...]   # (N, BB*Pp)

        # softmax over the node axis (torch dim=1); elementwise math stays f32.
        m = jnp.max(logits, axis=0, keepdims=True)
        e = jnp.exp(logits - m)
        s = jnp.sum(e, axis=0, keepdims=True)
        mask = e * pl.reciprocal(s, approx=False)                        # (N, BB*Pp)

        emb = emb_ref[...]                                               # (C, Pp)
        wu = wu_ref[...]
        bu = bu_ref[...]

        # Tiny per-batch-element node contraction + update (BB is small and static).
        for j in range(batch_block):
            lo = j * p_pad
            xp_j = x[:, lo:lo + p_pad] + emb                             # (C, Pp) f32
            mask_j = mask[:, lo:lo + p_pad]                              # (N, Pp)
            # nodes = xp @ mask^T, contracting the lane axis of both operands
            # (no explicit transpose / relayout of mask).
            nodes_j = lax.dot_general(
                xp_j.astype(cd), mask_j.astype(cd),
                dimension_numbers=(((1,), (1,)), ((), ())),
                preferred_element_type=jnp.float32)                      # (C, N)
            out_j = jnp.dot(wu.astype(cd), nodes_j.astype(cd),
                            preferred_element_type=jnp.float32) + bu     # (D, N)
            o_ref[j] = out_j

    return kernel


def glore_forward(x_nchw, pos_emb_chw, wm, bm, wp, bp, wu, bu,
                  *, batch_block=None, compute_dtype=jnp.float32):
    """x_nchw: (B, C, H, W) float32 -> (B, OFFSET_LSTM_DIM, NUM_NODES).

    compute_dtype: dtype of the MXU matmul operands (accumulation stays f32).
    jnp.bfloat16 is a good choice on v6e/v7x; default f32 keeps bit-tight accuracy.
    """
    B, C, H, W = x_nchw.shape
    P = H * W
    Pp = ((P + 127) // 128) * 128          # pad spatial axis to dense, unmasked lanes
    D = wu.shape[0]
    N = wm.shape[0]

    if batch_block is None:
        # Keep >= 2 grid steps when B >= 2 (both v7x TensorCores busy) while still
        # folding several batch elements onto the lane axis of each step.
        batch_block = B // 2 if (B >= 2 and B % 2 == 0) else B
    assert B % batch_block == 0, (B, batch_block)
    num_chunks = B // batch_block
    lane_blk = batch_block * Pp

    # ---- hoisted, data-independent work (done once, outside the kernel) ----
    # projected positional embedding:  emb = wp @ pe + bp        -> (C, P), zero-pad
    emb_cp = jnp.dot(wp, pos_emb_chw.reshape(C, P)) + bp[:, None]
    emb_cp = jnp.pad(emb_cp, ((0, 0), (0, Pp - P)))                      # (C, Pp)

    # x laid out with the batch folded onto the lane axis: (C, B*Pp), zero-padded.
    x_ncp = jnp.pad(x_nchw.reshape(B, C, P), ((0, 0), (0, 0), (0, Pp - P)))
    x_cbp = jnp.transpose(x_ncp, (1, 0, 2)).reshape(C, B * Pp)

    bm2 = bm.reshape(N, 1)
    bu2 = bu.reshape(D, 1)

    kernel = _make_glore_kernel(batch_block, Pp, compute_dtype)

    return pl.pallas_call(
        kernel,
        out_shape=jax.ShapeDtypeStruct((B, D, N), jnp.float32),
        grid_spec=pltpu.PrefetchScalarGridSpec(
            num_scalar_prefetch=0,
            grid=(num_chunks,),
            in_specs=[
                pl.BlockSpec((C, lane_blk), lambda i: (0, i)),   # x chunk (batch on lanes)
                pl.BlockSpec((C, Pp), lambda i: (0, 0)),         # projected pos emb
                pl.BlockSpec((N, C), lambda i: (0, 0)),          # mask_conv w
                pl.BlockSpec((N, 1), lambda i: (0, 0)),          # mask_conv b
                pl.BlockSpec((D, C), lambda i: (0, 0)),          # update w
                pl.BlockSpec((D, 1), lambda i: (0, 0)),          # update b
            ],
            out_specs=pl.BlockSpec((batch_block, D, N), lambda i: (i, 0, 0)),
        ),
        compiler_params=pltpu.CompilerParams(
            dimension_semantics=("parallel",)),
    )(x_cbp, emb_cp, wm, bm2, wu, bu2)


# --------------------------- pure-JAX reference ------------------------------
def glore_reference(x_nchw, pos_emb_chw, wm, bm, wp, bp, wu, bu):
    B, C, H, W = x_nchw.shape
    P = H * W
    xr = x_nchw.reshape(B, C, P)
    logits = jnp.einsum('nc,bcp->bnp', wm, xr) + bm[None, :, None]
    mask = jax.nn.softmax(logits, axis=1)
    emb = jnp.einsum('dc,cp->dp', wp, pos_emb_chw.reshape(C, P)) + bp[:, None]
    xp = xr + emb[None]
    nodes = jnp.einsum('bcp,bnp->bcn', xp, mask)
    out = jnp.einsum('dc,bcn->bdn', wu, nodes) + bu[None, :, None]
    return out


# ---------------------------------- main -------------------------------------
if __name__ == "__main__":
    B = 4
    C = INPUT_CHANNELS
    H = W = INPUT_HEIGHT
    D = OFFSET_LSTM_DIM
    N = NUM_NODES

    key = jax.random.PRNGKey(0)
    kx, kwm, kbm, kwp, kbp, kwu, kbu = jax.random.split(key, 7)

    # deterministic "weights" (synthetic; the module __init__ gives only the shapes)
    x = jax.random.normal(kx, (B, C, H, W), dtype=jnp.float32)
    wm = 0.1 * jax.random.normal(kwm, (N, C), dtype=jnp.float32)   # mask_conv (1x1)
    bm = 0.1 * jax.random.normal(kbm, (N,), dtype=jnp.float32)
    wp = 0.1 * jax.random.normal(kwp, (C, C), dtype=jnp.float32)   # sin_pos_emb_proj
    bp = 0.1 * jax.random.normal(kbp, (C,), dtype=jnp.float32)
    wu = 0.1 * jax.random.normal(kwu, (D, C), dtype=jnp.float32)   # update (Conv1d k=1)
    bu = 0.1 * jax.random.normal(kbu, (D,), dtype=jnp.float32)

    pe = positional_emb(C, H, W)                                   # (C, H, W) buffer

    # TODO(synk): set compute_dtype=jnp.bfloat16 on v6e/v7x for the faster MXU path.
    out = glore_forward(x, pe, wm, bm, wp, bp, wu, bu)
    out = jax.block_until_ready(out)

    ref = glore_reference(x, pe, wm, bm, wp, bp, wu, bu)
    assert out.shape == (B, D, N), out.shape
    assert jnp.allclose(out, ref, atol=1e-3, rtol=1e-3), (
        float(jnp.max(jnp.abs(out - ref))))

    print("KERNEL_OK")
</pallas_src>

<mosaic_0001>
module attributes {stable_mosaic.version = 11 : i64} {
  func.func @kernel(%arg0: i32, %arg1: memref<16x512xf32, #tpu.memory_space<vmem>>, %arg2: memref<16x256xf32, #tpu.memory_space<vmem>>, %arg3: memref<9x16xf32, #tpu.memory_space<vmem>>, %arg4: memref<9x1xf32, #tpu.memory_space<vmem>>, %arg5: memref<32x16xf32, #tpu.memory_space<vmem>>, %arg6: memref<32x1xf32, #tpu.memory_space<vmem>>, %arg7: memref<2x32x9xf32, #tpu.memory_space<vmem>>) attributes {dimension_semantics = [#tpu.dimension_semantics<parallel>], iteration_bounds = array<i64: 2>, scalar_prefetch = 0 : i64, scratch_operands = 0 : i64, tpu.core_type = #tpu.core_type<tc>, window_params = [{transform_indices = @transform_0, window_bounds = array<i64: 16, 512>}, {pipeline_mode = #tpu.pipeline_mode<synchronous>, transform_indices = @transform_1, window_bounds = array<i64: 16, 256>}, {pipeline_mode = #tpu.pipeline_mode<synchronous>, transform_indices = @transform_2, window_bounds = array<i64: 9, 16>}, {pipeline_mode = #tpu.pipeline_mode<synchronous>, transform_indices = @transform_3, window_bounds = array<i64: 9, 1>}, {pipeline_mode = #tpu.pipeline_mode<synchronous>, transform_indices = @transform_4, window_bounds = array<i64: 32, 16>}, {pipeline_mode = #tpu.pipeline_mode<synchronous>, transform_indices = @transform_5, window_bounds = array<i64: 32, 1>}, {transform_indices = @transform_6, window_bounds = array<i64: 2, 32, 9>}]} {
    %c0 = arith.constant 0 : index
    %c0_0 = arith.constant 0 : index
    %0 = vector.load %arg1[%c0, %c0_0] : memref<16x512xf32, #tpu.memory_space<vmem>>, vector<16x512xf32>
    %c0_1 = arith.constant 0 : index
    %c0_2 = arith.constant 0 : index
    %1 = vector.load %arg3[%c0_1, %c0_2] : memref<9x16xf32, #tpu.memory_space<vmem>>, vector<9x16xf32>
    %cst = arith.constant dense<0.000000e+00> : vector<9x512xf32>
    %2 = tpu.matmul %1, %0, %cst {dimension_numbers = #tpu.dot_dimension_numbers<[1], [0], [0], [1], [0, 0, 1, 1], [], []>} : vector<9x16xf32>, vector<16x512xf32>, vector<9x512xf32> -> vector<9x512xf32>
    %c0_3 = arith.constant 0 : index
    %c0_4 = arith.constant 0 : index
    %3 = vector.load %arg4[%c0_3, %c0_4] : memref<9x1xf32, #tpu.memory_space<vmem>>, vector<9x1xf32>
    %4 = vector.broadcast %3 : vector<9x1xf32> to vector<9x512xf32>
    %5 = arith.addf %2, %4 : vector<9x512xf32>
    %cst_5 = arith.constant dense<0xFF800000> : vector<512xf32>
    %6 = vector.multi_reduction <maximumf>, %5, %cst_5 [0] : vector<9x512xf32> to vector<512xf32>
    %7 = vector.shape_cast %6 : vector<512xf32> to vector<1x512xf32>
    %8 = vector.broadcast %7 : vector<1x512xf32> to vector<9x512xf32>
    %9 = arith.subf %5, %8 : vector<9x512xf32>
    %10 = math.exp %9 : vector<9x512xf32>
    %cst_6 = arith.constant dense<0.000000e+00> : vector<512xf32>
    %11 = vector.multi_reduction <add>, %10, %cst_6 [0] : vector<9x512xf32> to vector<512xf32>
    %12 = vector.shape_cast %11 : vector<512xf32> to vector<1x512xf32>
    %13 = tpu.reciprocal %12 : vector<1x512xf32> -> vector<1x512xf32>
    %14 = vector.broadcast %13 : vector<1x512xf32> to vector<9x512xf32>
    %15 = arith.mulf %10, %14 : vector<9x512xf32>
    %c0_7 = arith.constant 0 : index
    %c0_8 = arith.constant 0 : index
    %16 = vector.load %arg2[%c0_7, %c0_8] : memref<16x256xf32, #tpu.memory_space<vmem>>, vector<16x256xf32>
    %c0_9 = arith.constant 0 : index
    %c0_10 = arith.constant 0 : index
    %17 = vector.load %arg5[%c0_9, %c0_10] : memref<32x16xf32, #tpu.memory_space<vmem>>, vector<32x16xf32>
    %c0_11 = arith.constant 0 : index
    %c0_12 = arith.constant 0 : index
    %18 = vector.load %arg6[%c0_11, %c0_12] : memref<32x1xf32, #tpu.memory_space<vmem>>, vector<32x1xf32>
    %19 = vector.extract_strided_slice %0 {offsets = [0, 0], sizes = [16, 256], strides = [1, 1]} : vector<16x512xf32> to vector<16x256xf32>
    %20 = arith.addf %19, %16 : vector<16x256xf32>
    %21 = vector.extract_strided_slice %15 {offsets = [0, 0], sizes = [9, 256], strides = [1, 1]} : vector<9x512xf32> to vector<9x256xf32>
    %cst_13 = arith.constant dense<0.000000e+00> : vector<16x9xf32>
    %22 = tpu.matmul %20, %21, %cst_13 {dimension_numbers = #tpu.dot_dimension_numbers<[1], [1], [0], [0], [0, 0, 1, 0], [], []>} : vector<16x256xf32>, vector<9x256xf32>, vector<16x9xf32> -> vector<16x9xf32>
    %cst_14 = arith.constant dense<0.000000e+00> : vector<32x9xf32>
    %23 = tpu.matmul %17, %22, %cst_14 {dimension_numbers = #tpu.dot_dimension_numbers<[1], [0], [0], [1], [0, 0, 1, 1], [], []>} : vector<32x16xf32>, vector<16x9xf32>, vector<32x9xf32> -> vector<32x9xf32>
    %24 = vector.broadcast %18 : vector<32x1xf32> to vector<32x9xf32>
    %25 = arith.addf %23, %24 : vector<32x9xf32>
    %c0_15 = arith.constant 0 : index
    %c0_16 = arith.constant 0 : index
    %c0_17 = arith.constant 0 : index
    %26 = vector.load %arg7[%c0_15, %c0_16, %c0_17] : memref<2x32x9xf32, #tpu.memory_space<vmem>>, vector<1x32x9xf32>
    %27 = vector.shape_cast %26 : vector<1x32x9xf32> to vector<32x9xf32>
    %28 = vector.shape_cast %25 : vector<32x9xf32> to vector<1x32x9xf32>
    tpu.vector_store %arg7[%c0_15, %c0_16, %c0_17], %28 {strides = array<i32>} : memref<2x32x9xf32, #tpu.memory_space<vmem>>, vector<1x32x9xf32>,
    %29 = vector.extract_strided_slice %0 {offsets = [0, 256], sizes = [16, 256], strides = [1, 1]} : vector<16x512xf32> to vector<16x256xf32>
    %30 = arith.addf %29, %16 : vector<16x256xf32>
    %31 = vector.extract_strided_slice %15 {offsets = [0, 256], sizes = [9, 256], strides = [1, 1]} : vector<9x512xf32> to vector<9x256xf32>
    %cst_18 = arith.constant dense<0.000000e+00> : vector<16x9xf32>
    %32 = tpu.matmul %30, %31, %cst_18 {dimension_numbers = #tpu.dot_dimension_numbers<[1], [1], [0], [0], [0, 0, 1, 0], [], []>} : vector<16x256xf32>, vector<9x256xf32>, vector<16x9xf32> -> vector<16x9xf32>
    %cst_19 = arith.constant dense<0.000000e+00> : vector<32x9xf32>
    %33 = tpu.matmul %17, %32, %cst_19 {dimension_numbers = #tpu.dot_dimension_numbers<[1], [0], [0], [1], [0, 0, 1, 1], [], []>} : vector<32x16xf32>, vector<16x9xf32>, vector<32x9xf32> -> vector<32x9xf32>
    %34 = vector.broadcast %18 : vector<32x1xf32> to vector<32x9xf32>
    %35 = arith.addf %33, %34 : vector<32x9xf32>
    %c1 = arith.constant 1 : index
    %c0_20 = arith.constant 0 : index
    %c0_21 = arith.constant 0 : index
    %36 = vector.load %arg7[%c1, %c0_20, %c0_21] : memref<2x32x9xf32, #tpu.memory_space<vmem>>, vector<1x32x9xf32>
    %37 = vector.shape_cast %36 : vector<1x32x9xf32> to vector<32x9xf32>
    %38 = vector.shape_cast %35 : vector<32x9xf32> to vector<1x32x9xf32>
    tpu.vector_store %arg7[%c1, %c0_20, %c0_21], %38 {strides = array<i32>} : memref<2x32x9xf32, #tpu.memory_space<vmem>>, vector<1x32x9xf32>,
    return
  }
  func.func @transform_0(%arg0: i32) -> (i32, i32) {
    %c0_i32 = arith.constant 0 : i32
    %c0_i32_0 = arith.constant 0 : i32
    return %c0_i32, %arg0 : i32, i32
  }
  func.func @transform_1(%arg0: i32) -> (i32, i32) {
    %c0_i32 = arith.constant 0 : i32
    %c0_i32_0 = arith.constant 0 : i32
    %c0_i32_1 = arith.constant 0 : i32
    return %c0_i32, %c0_i32_0 : i32, i32
  }
  func.func @transform_2(%arg0: i32) -> (i32, i32) {
    %c0_i32 = arith.constant 0 : i32
    %c0_i32_0 = arith.constant 0 : i32
    %c0_i32_1 = arith.constant 0 : i32
    return %c0_i32, %c0_i32_0 : i32, i32
  }
  func.func @transform_3(%arg0: i32) -> (i32, i32) {
    %c0_i32 = arith.constant 0 : i32
    %c0_i32_0 = arith.constant 0 : i32
    %c0_i32_1 = arith.constant 0 : i32
    return %c0_i32, %c0_i32_0 : i32, i32
  }
  func.func @transform_4(%arg0: i32) -> (i32, i32) {
    %c0_i32 = arith.constant 0 : i32
    %c0_i32_0 = arith.constant 0 : i32
    %c0_i32_1 = arith.constant 0 : i32
    return %c0_i32, %c0_i32_0 : i32, i32
  }
  func.func @transform_5(%arg0: i32) -> (i32, i32) {
    %c0_i32 = arith.constant 0 : i32
    %c0_i32_0 = arith.constant 0 : i32
    %c0_i32_1 = arith.constant 0 : i32
    return %c0_i32, %c0_i32_0 : i32, i32
  }
  func.func @transform_6(%arg0: i32) -> (i32, i32, i32) {
    %c0_i32 = arith.constant 0 : i32
    %c0_i32_0 = arith.constant 0 : i32
    %c0_i32_1 = arith.constant 0 : i32
    return %arg0, %c0_i32, %c0_i32_0 : i32, i32, i32
  }
}

</mosaic_0001>

<llo_original>
// kernel: tpu_custom_call.1
$region0: #{tpu_custom_call.1}
  #allocation0 [shape = 'u32[]', space=smem, size = 0x4, offset = 0x4, fixed_abs, tag = 'smem constant byte address 0x4 - core index']
  #allocation1 [shape = 'u32[72,128]{1,0:T(1,128)}', space=vmem, size = 0x9000, scoped, tag = 'internal scratch']
  %s0 = inlined_call_operand.hbm [shape: f32[16,1024], index: 0, kind: input, shape index: {}]
  %s1 = inlined_call_operand.vmem [shape: f32[16,256], index: 1, kind: input, shape index: {}]
  %s2 = inlined_call_operand.vmem [shape: f32[9,16], index: 2, kind: input, shape index: {}]
  %s3 = inlined_call_operand.vmem [shape: f32[9,1], index: 3, kind: input, shape index: {}]
  %s4 = inlined_call_operand.vmem [shape: f32[32,16], index: 4, kind: input, shape index: {}]
  %s5 = inlined_call_operand.vmem [shape: f32[32,1], index: 5, kind: input, shape index: {}]
  %s6 = inlined_call_operand.vmem [shape: f32[4,32,9], index: 6, kind: output, shape index: {}]
  %s7 = sld [smem:[#allocation0]]
  $region61: #{tpu_custom_call.1} parent=0
    _
  %s9 = ssub.s32 1, %s7
  %s10 = scalar_select 0, %s9, %s7
  $region1: #{tpu_custom_call.1} parent=0
    #allocation2 [shape = 'u8[65536]{0}', space=vmem, size = 0x10000, scoped, tag = 'input window, operand 0']
    #allocation3 [shape = 's32[2]{0}', space=sflag, size = 0x8, scoped, tag = 'scoped memory for tpu_custom_call.1']
    %11 = vsyncpa [#allocation3], 0
    %s12 = scalar_lea.sflag [#allocation3], 1
    %13 = vsyncpa %s12, 0
    loop: start=0, step=1, limit=4
    $region2: #{tpu_custom_call.1} parent=1 // loop_pre_header
      _
    $region3: #{tpu_custom_call.1} parent=1 // loop_header
      %s15 = sphi 0, %s19
      %p16 = scmp.ge.s32.totalorder %s15, 4
      %s25 = sphi 0, %s27
      %s28 = sphi 0, %s25
      %s29 = sphi 0, %s28
      %s45 = sphi 0, %s29
      %s49 = sphi 0, %s49
      %s51 = sphi 0, %s49
      %s52 = sphi 0, %s51
      %s66 = sphi 0, %s52
      %s70 = sphi 0, %s70
      %s72 = sphi 0, %s70
      %s73 = sphi 0, %s72
      %s87 = sphi 0, %s73
      %s91 = sphi 0, %s91
      %s93 = sphi 0, %s91
      %s94 = sphi 0, %s93
      %s108 = sphi 0, %s94
      %s112 = sphi 0, %s112
      %s114 = sphi 0, %s112
      %s115 = sphi 0, %s114
      %s129 = sphi 0, %s115
      %s133 = sphi 0, %s133
      %s135 = sphi 0, %s133
      %s136 = sphi 0, %s135
      %s150 = sphi 0, %s136
      %s156 = sphi 0, %s158
      %s159 = sphi 0, %s156
      %s160 = sphi 0, %s159
      %s176 = sphi 0, %s160
    $region4: #{tpu_custom_call.1} parent=1 // loop_header_branch
      %18 = sbr.rel (%p16) target = $region8
    $region5: #{tpu_custom_call.1} parent=1 // loop_body
      %s20 = ssub.s32 %s15, 1
      %s21 = ssub.s32 %s15, 2
      %s22 = sadd.s32 %s15, 1
      %s23 = ssub.s32 %s15, %s22
      %p24 = scmp.eq.s32.totalorder %s23, 0
      %s26 = sadd.s32 %s25, 1
      %s27 = scalar_select %p24, %s25, %s26
      %p30 = pneg %p24
      %p31 = scmp.eq.s32.totalorder %s15, 1
      %p32 = por %p30, %p31
      %p33 = scmp.ne.s32.totalorder %s25, %s28
      %p34 = scmp.eq.s32.totalorder %s15, 0
      %p35 = por %p33, %p34
      %p36 = scmp.ne.s32.totalorder %s25, %s28
      %p37 = scmp.eq.s32.totalorder %s20, 1
      %p38 = por %p36, %p37
      %p39 = scmp.ne.s32.totalorder %s28, %s29
      %p40 = scmp.eq.s32.totalorder %s20, 0
      %p41 = por %p39, %p40
      %p42 = scmp.ne.s32.totalorder %s28, %s29
      %p43 = scmp.eq.s32.totalorder %s21, 1
      %p44 = por %p42, %p43
      %p46 = scmp.ne.s32.totalorder %s29, %s45
      %p47 = scmp.eq.s32.totalorder %s21, 0
      %p48 = por %p46, %p47
      %s50 = sadd.s32 %s49, 1
      %p53 = scmp.eq.s32.totalorder %s15, 1
      %p54 = scmp.ne.s32.totalorder %s49, %s51
      %p55 = scmp.eq.s32.totalorder %s15, 0
      %p56 = por %p54, %p55
      %p57 = scmp.ne.s32.totalorder %s49, %s51
      %p58 = scmp.eq.s32.totalorder %s20, 1
      %p59 = por %p57, %p58
      %p60 = scmp.ne.s32.totalorder %s51, %s52
      %p61 = scmp.eq.s32.totalorder %s20, 0
      %p62 = por %p60, %p61
      %p63 = scmp.ne.s32.totalorder %s51, %s52
      %p64 = scmp.eq.s32.totalorder %s21, 1
      %p65 = por %p63, %p64
      %p67 = scmp.ne.s32.totalorder %s52, %s66
      %p68 = scmp.eq.s32.totalorder %s21, 0
      %p69 = por %p67, %p68
      %s71 = sadd.s32 %s70, 1
      %p74 = scmp.eq.s32.totalorder %s15, 1
      %p75 = scmp.ne.s32.totalorder %s70, %s72
      %p76 = scmp.eq.s32.totalorder %s15, 0
      %p77 = por %p75, %p76
      %p78 = scmp.ne.s32.totalorder %s70, %s72
      %p79 = scmp.eq.s32.totalorder %s20, 1
      %p80 = por %p78, %p79
      %p81 = scmp.ne.s32.totalorder %s72, %s73
      %p82 = scmp.eq.s32.totalorder %s20, 0
      %p83 = por %p81, %p82
      %p84 = scmp.ne.s32.totalorder %s72, %s73
      %p85 = scmp.eq.s32.totalorder %s21, 1
      %p86 = por %p84, %p85
      %p88 = scmp.ne.s32.totalorder %s73, %s87
      %p89 = scmp.eq.s32.totalorder %s21, 0
      %p90 = por %p88, %p89
      %s92 = sadd.s32 %s91, 1
      %p95 = scmp.eq.s32.totalorder %s15, 1
      %p96 = scmp.ne.s32.totalorder %s91, %s93
      %p97 = scmp.eq.s32.totalorder %s15, 0
      %p98 = por %p96, %p97
      %p99 = scmp.ne.s32.totalorder %s91, %s93
      %p100 = scmp.eq.s32.totalorder %s20, 1
      %p101 = por %p99, %p100
      %p102 = scmp.ne.s32.totalorder %s93, %s94
      %p103 = scmp.eq.s32.totalorder %s20, 0
      %p104 = por %p102, %p103
      %p105 = scmp.ne.s32.totalorder %s93, %s94
      %p106 = scmp.eq.s32.totalorder %s21, 1
      %p107 = por %p105, %p106
      %p109 = scmp.ne.s32.totalorder %s94, %s108
      %p110 = scmp.eq.s32.totalorder %s21, 0
      %p111 = por %p109, %p110
      %s113 = sadd.s32 %s112, 1
      %p116 = scmp.eq.s32.totalorder %s15, 1
      %p117 = scmp.ne.s32.totalorder %s112, %s114
      %p118 = scmp.eq.s32.totalorder %s15, 0
      %p119 = por %p117, %p118
      %p120 = scmp.ne.s32.totalorder %s112, %s114
      %p121 = scmp.eq.s32.totalorder %s20, 1
      %p122 = por %p120, %p121
      %p123 = scmp.ne.s32.totalorder %s114, %s115
      %p124 = scmp.eq.s32.totalorder %s20, 0
      %p125 = por %p123, %p124
      %p126 = scmp.ne.s32.totalorder %s114, %s115
      %p127 = scmp.eq.s32.totalorder %s21, 1
      %p128 = por %p126, %p127
      %p130 = scmp.ne.s32.totalorder %s115, %s129
      %p131 = scmp.eq.s32.totalorder %s21, 0
      %p132 = por %p130, %p131
      %s134 = sadd.s32 %s133, 1
      %p137 = scmp.eq.s32.totalorder %s15, 1
      %p138 = scmp.ne.s32.totalorder %s133, %s135
      %p139 = scmp.eq.s32.totalorder %s15, 0
      %p140 = por %p138, %p139
      %p141 = scmp.ne.s32.totalorder %s133, %s135
      %p142 = scmp.eq.s32.totalorder %s20, 1
      %p143 = por %p141, %p142
      %p144 = scmp.ne.s32.totalorder %s135, %s136
      %p145 = scmp.eq.s32.totalorder %s20, 0
      %p146 = por %p144, %p145
      %p147 = scmp.ne.s32.totalorder %s135, %s136
      %p148 = scmp.eq.s32.totalorder %s21, 1
      %p149 = por %p147, %p148
      %p151 = scmp.ne.s32.totalorder %s136, %s150
      %p152 = scmp.eq.s32.totalorder %s21, 0
      %p153 = por %p151, %p152
      %s154 = ssub.s32 %s15, %s22
      %p155 = scmp.eq.s32.totalorder %s154, 0
      %s157 = sadd.s32 %s156, 1
      %s158 = scalar_select %p155, %s156, %s157
      %p161 = pneg %p155
      %p162 = scmp.eq.s32.totalorder %s15, 1
      %p163 = por %p161, %p162
      %p164 = scmp.ne.s32.totalorder %s156, %s159
      %p165 = scmp.eq.s32.totalorder %s15, 0
      %p166 = por %p164, %p165
      %p167 = scmp.ne.s32.totalorder %s156, %s159
      %p168 = scmp.eq.s32.totalorder %s20, 1
      %p169 = por %p167, %p168
      %p170 = scmp.ne.s32.totalorder %s159, %s160
      %p171 = scmp.eq.s32.totalorder %s20, 0
      %p172 = por %p170, %p171
      %p173 = scmp.ne.s32.totalorder %s159, %s160
      %p174 = scmp.eq.s32.totalorder %s21, 1
      %p175 = por %p173, %p174
      %p177 = scmp.ne.s32.totalorder %s160, %s176
      %p178 = scmp.eq.s32.totalorder %s21, 0
      %p179 = por %p177, %p178
      %p180 = scmp.le.s32.totalorder 1, %s15
      %p181 = scmp.lt.s32.totalorder %s15, 3
      %p182 = pnand %p180, %p181
      %p183 = pneg %p182
      // Predicated region
      $region9: #{tpu_custom_call.1} parent=5 // pred_check
        _
      $region10: #{tpu_custom_call.1} parent=5 // pred_check_branch
        %185 = sbr.rel (%p182) target = $region12
      $region11: #{tpu_custom_call.1} parent=5 // pred_region
        %s186 = ssub.s32 %s15, 1
        // Predicated region
        $region13: #{tpu_custom_call.1} parent=11 // pred_check
          %p187 = pneg %p62
        $region14: #{tpu_custom_call.1} parent=11 // pred_check_branch
          %189 = sbr.rel (%p187) target = $region16
        $region15: #{tpu_custom_call.1} parent=11 // pred_region
          _
        $region16: #{tpu_custom_call.1} parent=11 // pred_fallthru
          _
        // Predicated region
        $region17: #{tpu_custom_call.1} parent=11 // pred_check
          %p190 = pneg %p83
        $region18: #{tpu_custom_call.1} parent=11 // pred_check_branch
          %192 = sbr.rel (%p190) target = $region20
        $region19: #{tpu_custom_call.1} parent=11 // pred_region
          _
        $region20: #{tpu_custom_call.1} parent=11 // pred_fallthru
          _
        // Predicated region
        $region21: #{tpu_custom_call.1} parent=11 // pred_check
          %p193 = pneg %p104
        $region22: #{tpu_custom_call.1} parent=11 // pred_check_branch
          %195 = sbr.rel (%p193) target = $region24
        $region23: #{tpu_custom_call.1} parent=11 // pred_region
          _
        $region24: #{tpu_custom_call.1} parent=11 // pred_fallthru
          _
        // Predicated region
        $region25: #{tpu_custom_call.1} parent=11 // pred_check
          %p196 = pneg %p125
        $region26: #{tpu_custom_call.1} parent=11 // pred_check_branch
          %198 = sbr.rel (%p196) target = $region28
        $region27: #{tpu_custom_call.1} parent=11 // pred_region
          _
        $region28: #{tpu_custom_call.1} parent=11 // pred_fallthru
          _
        // Predicated region
        $region29: #{tpu_custom_call.1} parent=11 // pred_check
          %p199 = pneg %p146
        $region30: #{tpu_custom_call.1} parent=11 // pred_check_branch
          %201 = sbr.rel (%p199) target = $region32
        $region31: #{tpu_custom_call.1} parent=11 // pred_region
          _
        $region32: #{tpu_custom_call.1} parent=11 // pred_fallthru
          _
      $region12: #{tpu_custom_call.1} parent=5 // pred_fallthru
        _
      %p202 = scmp.lt.s32.totalorder %s15, 2
      // Predicated region
      $region33: #{tpu_custom_call.1} parent=5 // pred_check
        %p203 = pneg %p202
      $region34: #{tpu_custom_call.1} parent=5 // pred_check_branch
        %205 = sbr.rel (%p203) target = $region36
      $region35: #{tpu_custom_call.1} parent=5 // pred_region
        // Predicated region
        $region37: #{tpu_custom_call.1} parent=35 // pred_check
          %p206 = pneg %p35
        $region38: #{tpu_custom_call.1} parent=35 // pred_check_branch
          %208 = sbr.rel (%p206) target = $region40
        $region39: #{tpu_custom_call.1} parent=35 // pred_region
          %s209 = sand.u32 %s25, 1
          %s210 = scalar_lea.sflag [#allocation3], %s209
          %s211 = sand.u32 %s25, 1
          %s212 = smul.addr %s211, 64
          %s213 = scalar_lea.vmem [#allocation2], %s212
          %s214 = smul.u32 4, %s15
          %216 = vsyncadd %s210, 0
          %s217 = smul.addr %s214, 8
          %s218 = scalar_lea.hbm %s0, %s217
          %s219 = sshll.u32 %s218, 4
          %s220 = int_to_ptr.hbm [resolvable:$true] %s219
          %s221 = sshll.u32 %s213, 4
          %s222 = int_to_ptr.vmem [resolvable:$true] %s221
          %227 = dma.hbm_to_vmem [thread:$0]  %s220, 1024, %s222, %s210, 1024, 512, 32
        $region40: #{tpu_custom_call.1} parent=35 // pred_fallthru
          _
      $region36: #{tpu_custom_call.1} parent=5 // pred_fallthru
        _
      %p228 = scmp.le.s32.totalorder 1, %s15
      %p229 = scmp.lt.s32.totalorder %s15, 3
      %p230 = pnand %p228, %p229
      %p231 = pneg %p230
      // Predicated region
      $region41: #{tpu_custom_call.1} parent=5 // pred_check
        _
      $region42: #{tpu_custom_call.1} parent=5 // pred_check_branch
        %233 = sbr.rel (%p230) target = $region44
      $region43: #{tpu_custom_call.1} parent=5 // pred_region
        %s234 = ssub.s32 %s15, 1
        %s235 = sand.u32 %s28, 1
        %s236 = scalar_lea.sflag [#allocation3], %s235
        %s237 = sand.u32 %s28, 1
        %s238 = smul.addr %s237, 64
        %s239 = scalar_lea.vmem [#allocation2], %s238
        // Predicated region
        $region45: #{tpu_custom_call.1} parent=43 // pred_check
          %p240 = pneg %p41
        $region46: #{tpu_custom_call.1} parent=43 // pred_check_branch
          %242 = sbr.rel (%p240) target = $region48
        $region47: #{tpu_custom_call.1} parent=43 // pred_region
          %244 = dma.done %s236, 1024
        $region48: #{tpu_custom_call.1} parent=43 // pred_fallthru
          _
        %s245 = sand.u32 %s28, 1
        %s246 = scalar_lea.sflag [#allocation3], %s245
        %s247 = sand.u32 %s28, 1
        %s248 = smul.addr %s247, 64
        %s249 = scalar_lea.vmem [#allocation2], %s248
        %p250 = pneg %p41
        %p251 = pneg %p38
        %p252 = pneg %p62
        %p253 = pneg %p59
        %p254 = pneg %p83
        %p255 = pneg %p80
        %p256 = pneg %p104
        %p257 = pneg %p101
        %p258 = pneg %p125
        %p259 = pneg %p122
        %p260 = pneg %p146
        %p261 = pneg %p143
        %p262 = pneg %p172
        %p263 = pneg %p169
        %s264 = smul.u32 2, %s20
        %p265 = scmp.lt.s32.totalorder %s264, 3
        %s266 = scalar_select %p265, %s264, 3
        %s267 = smul.addr %s266, 4
        %s268 = smul.addr %s267, 8
        %s269 = scalar_lea.vmem %s6, %s268
        %s270 = smul.u32 4, %s20
        %s271 = smul.u32 2, %s20
        %p272 = scmp.lt.s32.totalorder %s271, 3
        %s273 = scalar_select %p272, %s271, 3
        %s274 = smul.addr %s273, 4
        %s275 = smul.addr %s274, 8
        %s276 = scalar_lea.vmem %s6, %s275
        %s277 = smul.u32 2, %s20
        %v278 = vld [vmem:[%s239] sm:$0xff]
        %v279 = vld [vmem:[%s239 + $0x8] sm:$0xff]
        %v280 = vld [vmem:[%s239 + $0x10] sm:$0xff]
        %v281 = vld [vmem:[%s239 + $0x18] sm:$0xff]
        %v282 = vld [vmem:[%s239 + $0x20] sm:$0xff]
        %v283 = vld [vmem:[%s239 + $0x28] sm:$0xff]
        %v284 = vld [vmem:[%s239 + $0x30] sm:$0xff]
        %v285 = vld [vmem:[%s239 + $0x38] sm:$0xff]
        %v286 = vld [vmem:[%s2] sm:$0xff]
        %v287 = vld [vmem:[%s2 + $0x8] sm:$0x1]
        %v288 = vld [vmem:[%s3] sm:$0xff]
        %v289 = vld [vmem:[%s3 + $0x8] sm:$0x1]
        %291 = vset.pattern.permute.xlu0 0
        %292 = vperm.xlu0 %291, %v288
        %v293 = vpop.permute.xlu0 %292
        %296 = vset.pattern.permute.xlu0 0
        %297 = vperm.xlu0 %296, %v289
        %v298 = vpop.permute.xlu0 %297
        %vm300 = vcmask 130048
        %v302 = vsel %vm300, %v286, 0
        %v305 = vsel %vm300, %v287, 0
        %307 = vmatpush.msra.mxu0 0.0
        %308 = vmatpush.msra.mxu0 0.0
        %309 = vmatpush.msra.mxu0 0.0
        %310 = vmatpush.msra.mxu0 0.0
        %311 = vmatpush.msra.mxu0 0.0
        %312 = vmatpush.msra.mxu0 0.0
        %313 = vmatpush.msra.mxu0 0.0
        %314 = vmatpush.msra.mxu0 0.0
        %315 = vmatpush.msra.mxu0 0.0
        %316 = vmatpush.msra.mxu0 0.0
        %317 = vmatpush.msra.mxu0 0.0
        %318 = vmatpush.msra.mxu0 0.0
        %319 = vmatpush.msra.mxu0 0.0
        %320 = vmatpush.msra.mxu0 0.0
        %321 = vmatpush.msra.mxu0 %v282
        %322 = vmatpush.msra.mxu0 %v278
        %323 = vmatmul.f32.gmra.mxu0 %v302
        %v324 = vpop.f32.mrf.mxu0
        %v325 = vadd.f32 %v293, %v324
        %326 = vmatmul.f32.gmra.mxu0 %v305
        %v327 = vpop.f32.mrf.mxu0
        %v328 = vadd.f32 %v298, %v327
        %329 = vdwg.mxu0
        %330 = vmatpush.msra.mxu0 0.0
        %331 = vmatpush.msra.mxu0 0.0
        %332 = vmatpush.msra.mxu0 0.0
        %333 = vmatpush.msra.mxu0 0.0
        %334 = vmatpush.msra.mxu0 0.0
        %335 = vmatpush.msra.mxu0 0.0
        %336 = vmatpush.msra.mxu0 0.0
        %337 = vmatpush.msra.mxu0 0.0
        %338 = vmatpush.msra.mxu0 0.0
        %339 = vmatpush.msra.mxu0 0.0
        %340 = vmatpush.msra.mxu0 0.0
        %341 = vmatpush.msra.mxu0 0.0
        %342 = vmatpush.msra.mxu0 0.0
        %343 = vmatpush.msra.mxu0 0.0
        %344 = vmatpush.msra.mxu0 %v283
        %345 = vmatpush.msra.mxu0 %v279
        %346 = vmatmul.f32.gmra.mxu0 %v302
        %v347 = vpop.f32.mrf.mxu0
        %v348 = vadd.f32 %v293, %v347
        %349 = vmatmul.f32.gmra.mxu0 %v305
        %v350 = vpop.f32.mrf.mxu0
        %v351 = vadd.f32 %v298, %v350
        %352 = vdwg.mxu0
        %353 = vmatpush.msra.mxu0 0.0
        %354 = vmatpush.msra.mxu0 0.0
        %355 = vmatpush.msra.mxu0 0.0
        %356 = vmatpush.msra.mxu0 0.0
        %357 = vmatpush.msra.mxu0 0.0
        %358 = vmatpush.msra.mxu0 0.0
        %359 = vmatpush.msra.mxu0 0.0
        %360 = vmatpush.msra.mxu0 0.0
        %361 = vmatpush.msra.mxu0 0.0
        %362 = vmatpush.msra.mxu0 0.0
        %363 = vmatpush.msra.mxu0 0.0
        %364 = vmatpush.msra.mxu0 0.0
        %365 = vmatpush.msra.mxu0 0.0
        %366 = vmatpush.msra.mxu0 0.0
        %367 = vmatpush.msra.mxu0 %v284
        %368 = vmatpush.msra.mxu0 %v280
        %369 = vmatmul.f32.gmra.mxu0 %v302
        %v370 = vpop.f32.mrf.mxu0
        %v371 = vadd.f32 %v293, %v370
        %372 = vmatmul.f32.gmra.mxu0 %v305
        %v373 = vpop.f32.mrf.mxu0
        %v374 = vadd.f32 %v298, %v373
        %375 = vdwg.mxu0
        %376 = vmatpush.msra.mxu0 0.0
        %377 = vmatpush.msra.mxu0 0.0
        %378 = vmatpush.msra.mxu0 0.0
        %379 = vmatpush.msra.mxu0 0.0
        %380 = vmatpush.msra.mxu0 0.0
        %381 = vmatpush.msra.mxu0 0.0
        %382 = vmatpush.msra.mxu0 0.0
        %383 = vmatpush.msra.mxu0 0.0
        %384 = vmatpush.msra.mxu0 0.0
        %385 = vmatpush.msra.mxu0 0.0
        %386 = vmatpush.msra.mxu0 0.0
        %387 = vmatpush.msra.mxu0 0.0
        %388 = vmatpush.msra.mxu0 0.0
        %389 = vmatpush.msra.mxu0 0.0
        %390 = vmatpush.msra.mxu0 %v285
        %391 = vmatpush.msra.mxu0 %v281
        %392 = vmatmul.f32.gmra.mxu0 %v302
        %v393 = vpop.f32.mrf.mxu0
        %v394 = vadd.f32 %v293, %v393
        %395 = vmatmul.f32.gmra.mxu0 %v305
        %v396 = vpop.f32.mrf.mxu0
        %v397 = vadd.f32 %v298, %v396
        %398 = vdwg.mxu0
        %vm399 = vcmask 1040384
        %v400 = vsel %vm399, %v328, -inf
        %v401 = vmax.f32 %v325, %v400
        %v402 = vrot.slane %v401, 4
        %v403 = vmax.f32 %v401, %v402
        %v404 = vrot.slane %v403, 2
        %v405 = vmax.f32 %v403, %v404
        %v406 = vrot.slane %v405, 1
        %v407 = vmax.f32 %v405, %v406
        %v408 = vsel %vm399, %v351, -inf
        %v409 = vmax.f32 %v348, %v408
        %v410 = vrot.slane %v409, 4
        %v411 = vmax.f32 %v409, %v410
        %v412 = vrot.slane %v411, 2
        %v413 = vmax.f32 %v411, %v412
        %v414 = vrot.slane %v413, 1
        %v415 = vmax.f32 %v413, %v414
        %v416 = vsel %vm399, %v374, -inf
        %v417 = vmax.f32 %v371, %v416
        %v418 = vrot.slane %v417, 4
        %v419 = vmax.f32 %v417, %v418
        %v420 = vrot.slane %v419, 2
        %v421 = vmax.f32 %v419, %v420
        %v422 = vrot.slane %v421, 1
        %v423 = vmax.f32 %v421, %v422
        %v424 = vsel %vm399, %v397, -inf
        %v425 = vmax.f32 %v394, %v424
        %v426 = vrot.slane %v425, 4
        %v427 = vmax.f32 %v425, %v426
        %v428 = vrot.slane %v427, 2
        %v429 = vmax.f32 %v427, %v428
        %v430 = vrot.slane %v429, 1
        %v431 = vmax.f32 %v429, %v430
        %v432 = vsub.f32 %v325, %v407
        %v433 = vsub.f32 %v348, %v415
        %v434 = vsub.f32 %v371, %v423
        %v435 = vsub.f32 %v394, %v431
        %v436 = vsub.f32 %v328, %v407
        %v437 = vsub.f32 %v351, %v415
        %v438 = vsub.f32 %v374, %v423
        %v439 = vsub.f32 %v397, %v431
        %v440 = vmul.f32 %v432, 1.442695
        %v441 = vpow.pop %v440
        %v442 = vmul.f32 %v433, 1.442695
        %v443 = vpow.pop %v442
        %v444 = vmul.f32 %v434, 1.442695
        %v445 = vpow.pop %v444
        %v446 = vmul.f32 %v435, 1.442695
        %v447 = vpow.pop %v446
        %v448 = vmul.f32 %v436, 1.442695
        %v449 = vpow.pop %v448
        %v450 = vmul.f32 %v437, 1.442695
        %v451 = vpow.pop %v450
        %v452 = vmul.f32 %v438, 1.442695
        %v453 = vpow.pop %v452
        %v454 = vmul.f32 %v439, 1.442695
        %v455 = vpow.pop %v454
        %v456 = vsel %vm399, %v449, 0.0
        %v457 = vadd.f32 %v441, %v456
        %v458 = vrot.slane %v457, 4
        %v459 = vadd.f32 %v457, %v458
        %v460 = vrot.slane %v459, 2
        %v461 = vadd.f32 %v459, %v460
        %v462 = vrot.slane %v461, 1
        %v463 = vadd.f32 %v461, %v462
        %v464 = vsel %vm399, %v451, 0.0
        %v465 = vadd.f32 %v443, %v464
        %v466 = vrot.slane %v465, 4
        %v467 = vadd.f32 %v465, %v466
        %v468 = vrot.slane %v467, 2
        %v469 = vadd.f32 %v467, %v468
        %v470 = vrot.slane %v469, 1
        %v471 = vadd.f32 %v469, %v470
        %v472 = vsel %vm399, %v453, 0.0
        %v473 = vadd.f32 %v445, %v472
        %v474 = vrot.slane %v473, 4
        %v475 = vadd.f32 %v473, %v474
        %v476 = vrot.slane %v475, 2
        %v477 = vadd.f32 %v475, %v476
        %v478 = vrot.slane %v477, 1
        %v479 = vadd.f32 %v477, %v478
        %v480 = vsel %vm399, %v455, 0.0
        %v481 = vadd.f32 %v447, %v480
        %v482 = vrot.slane %v481, 4
        %v483 = vadd.f32 %v481, %v482
        %v484 = vrot.slane %v483, 2
        %v485 = vadd.f32 %v483, %v484
        %v486 = vrot.slane %v485, 1
        %v487 = vadd.f32 %v485, %v486
        %v488 = vrcp.pop %v463
        %v489 = vmul.f32 %v463, %v488
        %v490 = vsub.f32 1.0, %v489
        %v491 = vmul.f32 %v488, %v490
        %v492 = vadd.f32 %v488, %v491
        %vm493 = vweird.f32 %v463
        %vm494 = vweird.f32 %v488
        %vm495 = vmor %vm493, %vm494
        %v496 = vsel %vm495, %v488, %v492
        %v497 = vand.u32 2147483647, %v463
        %vm498 = vcmp.eq.f32.partialorder %v497, 8.507059e+37
        %v499 = vand.u32 %v463, 2147483648
        %v500 = vor.u32 1.1754944e-38, %v499
        %v501 = vsel %vm498, %v500, %v496
        %v502 = vrcp.pop %v471
        %v503 = vmul.f32 %v471, %v502
        %v504 = vsub.f32 1.0, %v503
        %v505 = vmul.f32 %v502, %v504
        %v506 = vadd.f32 %v502, %v505
        %vm507 = vweird.f32 %v471
        %vm508 = vweird.f32 %v502
        %vm509 = vmor %vm507, %vm508
        %v510 = vsel %vm509, %v502, %v506
        %v511 = vand.u32 2147483647, %v471
        %vm512 = vcmp.eq.f32.partialorder %v511, 8.507059e+37
        %v513 = vand.u32 %v471, 2147483648
        %v514 = vor.u32 1.1754944e-38, %v513
        %v515 = vsel %vm512, %v514, %v510
        %v516 = vrcp.pop %v479
        %v517 = vmul.f32 %v479, %v516
        %v518 = vsub.f32 1.0, %v517
        %v519 = vmul.f32 %v516, %v518
        %v520 = vadd.f32 %v516, %v519
        %vm521 = vweird.f32 %v479
        %vm522 = vweird.f32 %v516
        %vm523 = vmor %vm521, %vm522
        %v524 = vsel %vm523, %v516, %v520
        %v525 = vand.u32 2147483647, %v479
        %vm526 = vcmp.eq.f32.partialorder %v525, 8.507059e+37
        %v527 = vand.u32 %v479, 2147483648
        %v528 = vor.u32 1.1754944e-38, %v527
        %v529 = vsel %vm526, %v528, %v524
        %v530 = vrcp.pop %v487
        %v531 = vmul.f32 %v487, %v530
        %v532 = vsub.f32 1.0, %v531
        %v533 = vmul.f32 %v530, %v532
        %v534 = vadd.f32 %v530, %v533
        %vm535 = vweird.f32 %v487
        %vm536 = vweird.f32 %v530
        %vm537 = vmor %vm535, %vm536
        %v538 = vsel %vm537, %v530, %v534
        %v539 = vand.u32 2147483647, %v487
        %vm540 = vcmp.eq.f32.partialorder %v539, 8.507059e+37
        %v541 = vand.u32 %v487, 2147483648
        %v542 = vor.u32 1.1754944e-38, %v541
        %v543 = vsel %vm540, %v542, %v538
        %v544 = vmul.f32 %v441, %v501
        %v545 = vmul.f32 %v443, %v515
        %v546 = vmul.f32 %v445, %v529
        %v547 = vmul.f32 %v447, %v543
        %v548 = vmul.f32 %v449, %v501
        %v549 = vmul.f32 %v451, %v515
        %v550 = vmul.f32 %v453, %v529
        %v551 = vmul.f32 %v455, %v543
        %v552 = vld [vmem:[%s1] sm:$0xff]
        %v553 = vld [vmem:[%s1 + $0x8] sm:$0xff]
        %v554 = vld [vmem:[%s1 + $0x10] sm:$0xff]
        %v555 = vld [vmem:[%s1 + $0x18] sm:$0xff]
        %v556 = vld [vmem:[%s4] sm:$0xff]
        %v557 = vld [vmem:[%s4 + $0x8] sm:$0xff]
        %v558 = vld [vmem:[%s4 + $0x10] sm:$0xff]
        %v559 = vld [vmem:[%s4 + $0x18] sm:$0xff]
        %v560 = vld [vmem:[%s5] sm:$0xff]
        %v561 = vld [vmem:[%s5 + $0x8] sm:$0xff]
        %v562 = vld [vmem:[%s5 + $0x10] sm:$0xff]
        %v563 = vld [vmem:[%s5 + $0x18] sm:$0xff]
        %v564 = vadd.f32 %v278, %v552
        %v565 = vadd.f32 %v279, %v553
        %v566 = vadd.f32 %v282, %v554
        %v567 = vadd.f32 %v283, %v555
        %568 = vmatpush.xpose.msra.mxu0 0.0
        %569 = vmatpush.xpose.msra.mxu0 0.0
        %570 = vmatpush.xpose.msra.mxu0 0.0
        %571 = vmatpush.xpose.msra.mxu0 0.0
        %572 = vmatpush.xpose.msra.mxu0 0.0
        %573 = vmatpush.xpose.msra.mxu0 0.0
        %574 = vmatpush.xpose.msra.mxu0 0.0
        %575 = vmatpush.xpose.msra.mxu0 0.0
        %576 = vmatpush.xpose.msra.mxu0 0.0
        %577 = vmatpush.xpose.msra.mxu0 0.0
        %578 = vmatpush.xpose.msra.mxu0 0.0
        %579 = vmatpush.xpose.msra.mxu0 0.0
        %580 = vmatpush.xpose.msra.mxu0 0.0
        %581 = vmatpush.xpose.msra.mxu0 0.0
        %582 = vmatpush.xpose.msra.mxu0 %v548
        %583 = vmatpush.xpose.msra.mxu0 %v544
        %584 = vmatmul.f32.gmra.mxu0 %v564
        %v585 = vpop.f32.mrf.mxu0
        %v586 = vadd.f32 0.0, %v585
        %587 = vmatmul.f32.gmra.mxu0 %v566
        %v588 = vpop.f32.mrf.mxu0
        %v589 = vadd.f32 0.0, %v588
        %590 = vdwg.mxu0
        %591 = vmatpush.xpose.msra.mxu0 0.0
        %592 = vmatpush.xpose.msra.mxu0 0.0
        %593 = vmatpush.xpose.msra.mxu0 0.0
        %594 = vmatpush.xpose.msra.mxu0 0.0
        %595 = vmatpush.xpose.msra.mxu0 0.0
        %596 = vmatpush.xpose.msra.mxu0 0.0
        %597 = vmatpush.xpose.msra.mxu0 0.0
        %598 = vmatpush.xpose.msra.mxu0 0.0
        %599 = vmatpush.xpose.msra.mxu0 0.0
        %600 = vmatpush.xpose.msra.mxu0 0.0
        %601 = vmatpush.xpose.msra.mxu0 0.0
        %602 = vmatpush.xpose.msra.mxu0 0.0
        %603 = vmatpush.xpose.msra.mxu0 0.0
        %604 = vmatpush.xpose.msra.mxu0 0.0
        %605 = vmatpush.xpose.msra.mxu0 %v549
        %606 = vmatpush.xpose.msra.mxu0 %v545
        %607 = vmatmul.f32.gmra.mxu0 %v565
        %v608 = vpop.f32.mrf.mxu0
        %v609 = vadd.f32 %v586, %v608
        %610 = vmatmul.f32.gmra.mxu0 %v567
        %v611 = vpop.f32.mrf.mxu0
        %v612 = vadd.f32 %v589, %v611
        %613 = vdwg.mxu0
        %615 = vset.pattern.permute.xlu0 0
        %616 = vperm.xlu0 %615, %v560
        %v617 = vpop.permute.xlu0 %616
        %620 = vset.pattern.permute.xlu0 0
        %621 = vperm.xlu0 %620, %v561
        %v622 = vpop.permute.xlu0 %621
        %625 = vset.pattern.permute.xlu0 0
        %626 = vperm.xlu0 %625, %v562
        %v627 = vpop.permute.xlu0 %626
        %630 = vset.pattern.permute.xlu0 0
        %631 = vperm.xlu0 %630, %v563
        %v632 = vpop.permute.xlu0 %631
        %v635 = vsel %vm300, %v556, 0
        %v638 = vsel %vm300, %v557, 0
        %v641 = vsel %vm300, %v558, 0
        %v644 = vsel %vm300, %v559, 0
        %646 = vmatpush.msra.mxu0 0.0
        %647 = vmatpush.msra.mxu0 0.0
        %648 = vmatpush.msra.mxu0 0.0
        %649 = vmatpush.msra.mxu0 0.0
        %650 = vmatpush.msra.mxu0 0.0
        %651 = vmatpush.msra.mxu0 0.0
        %652 = vmatpush.msra.mxu0 0.0
        %653 = vmatpush.msra.mxu0 0.0
        %654 = vmatpush.msra.mxu0 0.0
        %655 = vmatpush.msra.mxu0 0.0
        %656 = vmatpush.msra.mxu0 0.0
        %657 = vmatpush.msra.mxu0 0.0
        %658 = vmatpush.msra.mxu0 0.0
        %659 = vmatpush.msra.mxu0 0.0
        %660 = vmatpush.msra.mxu0 %v612
        %661 = vmatpush.msra.mxu0 %v609
        %662 = vmatmul.f32.gmra.mxu0 %v635
        %v663 = vpop.f32.mrf.mxu0
        %v664 = vadd.f32 %v617, %v663
        %665 = vmatmul.f32.gmra.mxu0 %v638
        %v666 = vpop.f32.mrf.mxu0
        %v667 = vadd.f32 %v622, %v666
        %668 = vmatmul.f32.gmra.mxu0 %v641
        %v669 = vpop.f32.mrf.mxu0
        %v670 = vadd.f32 %v627, %v669
        %671 = vmatmul.f32.gmra.mxu0 %v644
        %v672 = vpop.f32.mrf.mxu0
        %v673 = vadd.f32 %v632, %v672
        %674 = vdwg.mxu0
        %vm675 = vcmask 72704
        %676 = vst.msk [vmem:[%s276] sm:$0xff] %vm675, %v664
        %677 = vst.msk [vmem:[%s276 + $0x8] sm:$0xff] %vm675, %v667
        %678 = vst.msk [vmem:[%s276 + $0x10] sm:$0xff] %vm675, %v670
        %679 = vst.msk [vmem:[%s276 + $0x18] sm:$0xff] %vm675, %v673
        %v680 = vadd.f32 %v280, %v552
        %v681 = vadd.f32 %v281, %v553
        %v682 = vadd.f32 %v284, %v554
        %v683 = vadd.f32 %v285, %v555
        %684 = vmatpush.xpose.msra.mxu0 0.0
        %685 = vmatpush.xpose.msra.mxu0 0.0
        %686 = vmatpush.xpose.msra.mxu0 0.0
        %687 = vmatpush.xpose.msra.mxu0 0.0
        %688 = vmatpush.xpose.msra.mxu0 0.0
        %689 = vmatpush.xpose.msra.mxu0 0.0
        %690 = vmatpush.xpose.msra.mxu0 0.0
        %691 = vmatpush.xpose.msra.mxu0 0.0
        %692 = vmatpush.xpose.msra.mxu0 0.0
        %693 = vmatpush.xpose.msra.mxu0 0.0
        %694 = vmatpush.xpose.msra.mxu0 0.0
        %695 = vmatpush.xpose.msra.mxu0 0.0
        %696 = vmatpush.xpose.msra.mxu0 0.0
        %697 = vmatpush.xpose.msra.mxu0 0.0
        %698 = vmatpush.xpose.msra.mxu0 %v550
        %699 = vmatpush.xpose.msra.mxu0 %v546
        %700 = vmatmul.f32.gmra.mxu0 %v680
        %v701 = vpop.f32.mrf.mxu0
        %v702 = vadd.f32 0.0, %v701
        %703 = vmatmul.f32.gmra.mxu0 %v682
        %v704 = vpop.f32.mrf.mxu0
        %v705 = vadd.f32 0.0, %v704
        %706 = vdwg.mxu0
        %707 = vmatpush.xpose.msra.mxu0 0.0
        %708 = vmatpush.xpose.msra.mxu0 0.0
        %709 = vmatpush.xpose.msra.mxu0 0.0
        %710 = vmatpush.xpose.msra.mxu0 0.0
        %711 = vmatpush.xpose.msra.mxu0 0.0
        %712 = vmatpush.xpose.msra.mxu0 0.0
        %713 = vmatpush.xpose.msra.mxu0 0.0
        %714 = vmatpush.xpose.msra.mxu0 0.0
        %715 = vmatpush.xpose.msra.mxu0 0.0
        %716 = vmatpush.xpose.msra.mxu0 0.0
        %717 = vmatpush.xpose.msra.mxu0 0.0
        %718 = vmatpush.xpose.msra.mxu0 0.0
        %719 = vmatpush.xpose.msra.mxu0 0.0
        %720 = vmatpush.xpose.msra.mxu0 0.0
        %721 = vmatpush.xpose.msra.mxu0 %v551
        %722 = vmatpush.xpose.msra.mxu0 %v547
        %723 = vmatmul.f32.gmra.mxu0 %v681
        %v724 = vpop.f32.mrf.mxu0
        %v725 = vadd.f32 %v702, %v724
        %726 = vmatmul.f32.gmra.mxu0 %v683
        %v727 = vpop.f32.mrf.mxu0
        %v728 = vadd.f32 %v705, %v727
        %729 = vdwg.mxu0
        %730 = vmatpush.msra.mxu0 0.0
        %731 = vmatpush.msra.mxu0 0.0
        %732 = vmatpush.msra.mxu0 0.0
        %733 = vmatpush.msra.mxu0 0.0
        %734 = vmatpush.msra.mxu0 0.0
        %735 = vmatpush.msra.mxu0 0.0
        %736 = vmatpush.msra.mxu0 0.0
        %737 = vmatpush.msra.mxu0 0.0
        %738 = vmatpush.msra.mxu0 0.0
        %739 = vmatpush.msra.mxu0 0.0
        %740 = vmatpush.msra.mxu0 0.0
        %741 = vmatpush.msra.mxu0 0.0
        %742 = vmatpush.msra.mxu0 0.0
        %743 = vmatpush.msra.mxu0 0.0
        %744 = vmatpush.msra.mxu0 %v728
        %745 = vmatpush.msra.mxu0 %v725
        %746 = vmatmul.f32.gmra.mxu0 %v635
        %v747 = vpop.f32.mrf.mxu0
        %v748 = vadd.f32 %v617, %v747
        %749 = vmatmul.f32.gmra.mxu0 %v638
        %v750 = vpop.f32.mrf.mxu0
        %v751 = vadd.f32 %v622, %v750
        %752 = vmatmul.f32.gmra.mxu0 %v641
        %v753 = vpop.f32.mrf.mxu0
        %v754 = vadd.f32 %v627, %v753
        %755 = vmatmul.f32.gmra.mxu0 %v644
        %v756 = vpop.f32.mrf.mxu0
        %v757 = vadd.f32 %v632, %v756
        %758 = vdwg.mxu0
        %s759 = scalar_lea.vmem %s276, 32
        %760 = vst.msk [vmem:[%s759] sm:$0xff] %vm675, %v748
        %761 = vst.msk [vmem:[%s759 + $0x8] sm:$0xff] %vm675, %v751
        %762 = vst.msk [vmem:[%s759 + $0x10] sm:$0xff] %vm675, %v754
        %763 = vst.msk [vmem:[%s759 + $0x18] sm:$0xff] %vm675, %v757
        %s764 = smul.u32 2, %s20
        %p765 = scmp.lt.s32.totalorder %s764, 3
        %s766 = scalar_select %p765, %s764, 3
        %s767 = smul.addr %s766, 4
        %s768 = smul.addr %s767, 8
        %s769 = scalar_lea.vmem %s6, %s768
        // Predicated region
        $region49: #{tpu_custom_call.1} parent=43 // pred_check
          %p770 = pneg %p169
        $region50: #{tpu_custom_call.1} parent=43 // pred_check_branch
          %772 = sbr.rel (%p770) target = $region52
        $region51: #{tpu_custom_call.1} parent=43 // pred_region
          %s773 = smul.u32 2, %s20
        $region52: #{tpu_custom_call.1} parent=43 // pred_fallthru
          _
      $region44: #{tpu_custom_call.1} parent=5 // pred_fallthru
        _
      %p774 = scmp.le.s32.totalorder 2, %s15
      // Predicated region
      $region53: #{tpu_custom_call.1} parent=5 // pred_check
        %p775 = pneg %p774
      $region54: #{tpu_custom_call.1} parent=5 // pred_check_branch
        %777 = sbr.rel (%p775) target = $region56
      $region55: #{tpu_custom_call.1} parent=5 // pred_region
        %s778 = ssub.s32 %s15, 2
        // Predicated region
        $region57: #{tpu_custom_call.1} parent=55 // pred_check
          %p779 = pneg %p175
        $region58: #{tpu_custom_call.1} parent=55 // pred_check_branch
          %781 = sbr.rel (%p779) target = $region60
        $region59: #{tpu_custom_call.1} parent=55 // pred_region
          %s782 = smul.u32 2, %s21
          %p783 = scmp.lt.s32.totalorder %s782, 3
          %s784 = scalar_select %p783, %s782, 3
          %s785 = smul.addr %s784, 4
          %s786 = smul.addr %s785, 8
          %s787 = scalar_lea.vmem %s6, %s786
        $region60: #{tpu_custom_call.1} parent=55 // pred_fallthru
          _
      $region56: #{tpu_custom_call.1} parent=5 // pred_fallthru
        _
    $region6: #{tpu_custom_call.1} parent=1 // loop_footer
      %s19 = sadd.s32 1, %s15
    $region7: #{tpu_custom_call.1} parent=1 // loop_footer_branch
      %14 = sbr.rel target = $region3
    $region8: #{tpu_custom_call.1} parent=1 // loop_exit
      _
    %788 = vsyncpa [#allocation3], 1
    %s789 = scalar_lea.sflag [#allocation3], 1
    %790 = vsyncpa %s789, 1

</llo_original>
